<compile_context>
chip_gen: v7x
topology: tpu7x:2x2x1
jax: 0.10.0
libtpu: 0.0.40
codegen_flags: <defaults>
</compile_context>

<pallas_src>
import functools

import jax
import jax.numpy as jnp
import numpy as np
from jax import lax
from jax.experimental import pallas as pl
from jax.experimental.pallas import tpu as pltpu


# ----------------------------- Pallas kernel --------------------------------

def _resnet_block_kernel(x_ref, w1_ref, s1_ref, w2_ref, s2_ref,
                         w3_ref, s3_ref, wd_ref, sd_ref, o_ref):
    """Fused ResNetBlock1d forward for one batch element (eval mode)."""
    x = x_ref[0]                                      # (C_in_p, L) f32

    def conv_bn_act(h, w_flat, shift, K, P, slope):
        # h: (C, L); w_flat: (C_out, K*C) tap-major; shift: (C_out, 1)
        C, L = h.shape
        if P > 0:
            z = jnp.zeros((C, P), jnp.float32)
            hp = jnp.concatenate([z, h, z], axis=1)   # 'same' pad, stays in VMEM
        else:
            hp = h
        # im2col: stack K shifted slices -> single MXU matmul per conv.
        a = jnp.concatenate([hp[:, k:k + L] for k in range(K)], axis=0)
        y = jnp.dot(w_flat, a, preferred_element_type=jnp.float32) + shift
        return jnp.where(y >= 0.0, y, slope * y)      # LeakyReLU

    h = conv_bn_act(x, w1_ref[...], s1_ref[...], K=5, P=2, slope=0.2)
    h = conv_bn_act(h, w2_ref[...], s2_ref[...], K=5, P=2, slope=0.2)
    y = conv_bn_act(h, w3_ref[...], s3_ref[...], K=3, P=1, slope=0.2)

    # downsample branch: 1x1 conv (no bias) + BN (scale folded into wd), no act.
    r = jnp.dot(wd_ref[...], x, preferred_element_type=jnp.float32) + sd_ref[...]

    # residual add + final LeakyReLU (nn.LeakyReLU default slope = 0.01).
    s = y + r
    o_ref[0] = jnp.where(s >= 0.0, s, 0.01 * s).astype(o_ref.dtype)


# ------------------------------ wrappers -------------------------------------

def _fold_conv_bn(w, bias, bn, c_in_pad=None, eps=1e-5):
    """Fold eval-mode BatchNorm1d (+ conv bias) into the conv weight / a shift.

    Returns:
      w_flat: (C_out, K*C_in_pad) tap-major im2col weight with BN scale folded.
      shift : (C_out, 1) per-channel additive term.
    """
    gamma, beta, mean, var = bn
    C_out, C_in, K = w.shape
    scale = gamma / jnp.sqrt(var + eps)                       # (C_out,)
    shift = beta + scale * (bias - mean)                      # (C_out,)
    wf = w * scale[:, None, None]                             # fold scale
    if c_in_pad is not None and c_in_pad > C_in:
        wf = jnp.pad(wf, ((0, 0), (0, c_in_pad - C_in), (0, 0)))
    c_in_p = wf.shape[1]
    # (C_out, C_in_p, K) -> (C_out, K, C_in_p) -> (C_out, K*C_in_p): tap-major,
    # matches the in-kernel im2col row order a[k*C + ci, :].
    wf = jnp.transpose(wf, (0, 2, 1)).reshape(C_out, K * c_in_p)
    return wf.astype(jnp.float32), shift[:, None].astype(jnp.float32)


@jax.jit
def resnet_block_1d(x, p):
    """Forward pass of ResNetBlock1d (eval mode) as a single fused Pallas kernel."""
    N, C_in, L = x.shape
    C_in_p = ((C_in + 7) // 8) * 8                    # pad channels to sublane tile
    C2 = p["w1"].shape[0]                             # out_channels * 2
    C_out = p["w3"].shape[0]

    w1, s1 = _fold_conv_bn(p["w1"], p["b1"], p["bn1"], c_in_pad=C_in_p)
    w2, s2 = _fold_conv_bn(p["w2"], p["b2"], p["bn2"])
    w3, s3 = _fold_conv_bn(p["w3"], p["b3"], p["bn3"])
    zero_b = jnp.zeros((C_out,), jnp.float32)
    wd, sd = _fold_conv_bn(p["wd"], zero_b, p["bnd"], c_in_pad=C_in_p)

    xp = x if C_in_p == C_in else jnp.pad(x, ((0, 0), (0, C_in_p - C_in), (0, 0)))

    return pl.pallas_call(
        _resnet_block_kernel,
        out_shape=jax.ShapeDtypeStruct((N, C_out, L), jnp.float32),
        grid=(N,),
        in_specs=[
            pl.BlockSpec((1, C_in_p, L), lambda n: (n, 0, 0)),
            pl.BlockSpec(w1.shape, lambda n: (0, 0)),
            pl.BlockSpec(s1.shape, lambda n: (0, 0)),
            pl.BlockSpec(w2.shape, lambda n: (0, 0)),
            pl.BlockSpec(s2.shape, lambda n: (0, 0)),
            pl.BlockSpec(w3.shape, lambda n: (0, 0)),
            pl.BlockSpec(s3.shape, lambda n: (0, 0)),
            pl.BlockSpec(wd.shape, lambda n: (0, 0)),
            pl.BlockSpec(sd.shape, lambda n: (0, 0)),
        ],
        out_specs=pl.BlockSpec((1, C_out, L), lambda n: (n, 0, 0)),
        compiler_params=pltpu.CompilerParams(dimension_semantics=("parallel",)),
    )(xp, w1, s1, w2, s2, w3, s3, wd, sd)


# ----------------------- pure-JAX reference (sanity) ------------------------

def _ref_conv_bn_act(x, w, bias, bn, padding, slope):
    gamma, beta, mean, var = bn
    y = lax.conv_general_dilated(
        x, w, window_strides=(1,), padding=[(padding, padding)],
        dimension_numbers=("NCH", "OIH", "NCH"))
    y = y + bias[None, :, None]
    y = (y - mean[None, :, None]) / jnp.sqrt(var[None, :, None] + 1e-5)
    y = y * gamma[None, :, None] + beta[None, :, None]
    return jnp.where(y >= 0, y, slope * y)


def ref_resnet_block_1d(x, p):
    h = _ref_conv_bn_act(x, p["w1"], p["b1"], p["bn1"], 2, 0.2)
    h = _ref_conv_bn_act(h, p["w2"], p["b2"], p["bn2"], 2, 0.2)
    y = _ref_conv_bn_act(h, p["w3"], p["b3"], p["bn3"], 1, 0.2)
    zero_bias = jnp.zeros_like(p["bnd"][0])
    r = _ref_conv_bn_act(x, p["wd"], zero_bias, p["bnd"], 0, 1.0)
    s = y + r
    return jnp.where(s >= 0, s, 0.01 * s)


# ------------------------------- params -------------------------------------

def _bn_params(key, c):
    k1, k2, k3, k4 = jax.random.split(key, 4)
    gamma = jax.random.uniform(k1, (c,), jnp.float32, 0.5, 1.5)
    beta = jax.random.normal(k2, (c,), jnp.float32) * 0.1
    mean = jax.random.normal(k3, (c,), jnp.float32) * 0.1
    var = jax.random.uniform(k4, (c,), jnp.float32, 0.5, 1.5)
    return gamma, beta, mean, var


def make_params(key, in_channels, out_channels):
    c2 = out_channels * 2
    ks = jax.random.split(key, 12)

    def conv_w(k, co, ci, K):
        fan_in = ci * K
        return jax.random.normal(k, (co, ci, K), jnp.float32) / np.sqrt(fan_in)

    return {
        "w1": conv_w(ks[0], c2, in_channels, 5),
        "b1": jax.random.normal(ks[1], (c2,), jnp.float32) * 0.05,
        "bn1": _bn_params(ks[2], c2),
        "w2": conv_w(ks[3], c2, c2, 5),
        "b2": jax.random.normal(ks[4], (c2,), jnp.float32) * 0.05,
        "bn2": _bn_params(ks[5], c2),
        "w3": conv_w(ks[6], out_channels, c2, 3),
        "b3": jax.random.normal(ks[7], (out_channels,), jnp.float32) * 0.05,
        "bn3": _bn_params(ks[8], out_channels),
        "wd": conv_w(ks[9], out_channels, in_channels, 1),
        "bnd": _bn_params(ks[10], out_channels),
    }


# --------------------------------- main --------------------------------------

if __name__ == "__main__":
    N, C_IN, C_OUT, L = 2, 4, 8, 128

    key = jax.random.PRNGKey(0)
    kx, kp = jax.random.split(key)
    x = jax.random.normal(kx, (N, C_IN, L), jnp.float32)
    params = make_params(kp, C_IN, C_OUT)

    out = jax.block_until_ready(resnet_block_1d(x, params))
    assert out.shape == (N, C_OUT, L), out.shape

    ref = jax.block_until_ready(ref_resnet_block_1d(x, params))
    np.testing.assert_allclose(np.asarray(out), np.asarray(ref),
                               rtol=1e-4, atol=1e-4)

    print("KERNEL_OK")
</pallas_src>

<mosaic_0001>
module attributes {stable_mosaic.version = 11 : i64} {
  func.func @_resnet_block_kernel(%arg0: i32, %arg1: memref<1x8x128xf32, #tpu.memory_space<vmem>>, %arg2: memref<16x40xf32, #tpu.memory_space<vmem>>, %arg3: memref<16x1xf32, #tpu.memory_space<vmem>>, %arg4: memref<16x80xf32, #tpu.memory_space<vmem>>, %arg5: memref<16x1xf32, #tpu.memory_space<vmem>>, %arg6: memref<8x48xf32, #tpu.memory_space<vmem>>, %arg7: memref<8x1xf32, #tpu.memory_space<vmem>>, %arg8: memref<8x8xf32, #tpu.memory_space<vmem>>, %arg9: memref<8x1xf32, #tpu.memory_space<vmem>>, %arg10: memref<1x8x128xf32, #tpu.memory_space<vmem>>) attributes {dimension_semantics = [#tpu.dimension_semantics<parallel>], iteration_bounds = array<i64: 2>, scalar_prefetch = 0 : i64, scratch_operands = 0 : i64, tpu.core_type = #tpu.core_type<tc>, window_params = [{transform_indices = @transform_0, window_bounds = array<i64: 1, 8, 128>}, {pipeline_mode = #tpu.pipeline_mode<synchronous>, transform_indices = @transform_1, window_bounds = array<i64: 16, 40>}, {pipeline_mode = #tpu.pipeline_mode<synchronous>, transform_indices = @transform_2, window_bounds = array<i64: 16, 1>}, {pipeline_mode = #tpu.pipeline_mode<synchronous>, transform_indices = @transform_3, window_bounds = array<i64: 16, 80>}, {pipeline_mode = #tpu.pipeline_mode<synchronous>, transform_indices = @transform_4, window_bounds = array<i64: 16, 1>}, {pipeline_mode = #tpu.pipeline_mode<synchronous>, transform_indices = @transform_5, window_bounds = array<i64: 8, 48>}, {pipeline_mode = #tpu.pipeline_mode<synchronous>, transform_indices = @transform_6, window_bounds = array<i64: 8, 1>}, {pipeline_mode = #tpu.pipeline_mode<synchronous>, transform_indices = @transform_7, window_bounds = array<i64: 8, 8>}, {pipeline_mode = #tpu.pipeline_mode<synchronous>, transform_indices = @transform_8, window_bounds = array<i64: 8, 1>}, {transform_indices = @transform_9, window_bounds = array<i64: 1, 8, 128>}]} {
    %c0 = arith.constant 0 : index
    %c0_0 = arith.constant 0 : index
    %c0_1 = arith.constant 0 : index
    %0 = vector.load %arg1[%c0, %c0_0, %c0_1] : memref<1x8x128xf32, #tpu.memory_space<vmem>>, vector<1x8x128xf32>
    %1 = vector.shape_cast %0 : vector<1x8x128xf32> to vector<8x128xf32>
    %c0_2 = arith.constant 0 : index
    %c0_3 = arith.constant 0 : index
    %2 = vector.load %arg2[%c0_2, %c0_3] : memref<16x40xf32, #tpu.memory_space<vmem>>, vector<16x40xf32>
    %c0_4 = arith.constant 0 : index
    %c0_5 = arith.constant 0 : index
    %3 = vector.load %arg3[%c0_4, %c0_5] : memref<16x1xf32, #tpu.memory_space<vmem>>, vector<16x1xf32>
    %cst = arith.constant 0.000000e+00 : f32
    %4 = vector.broadcast %cst : f32 to vector<8x2xf32>
    %5 = tpu.concatenate %4, %1, %4 in 1 : vector<8x2xf32>, vector<8x128xf32>, vector<8x2xf32> -> vector<8x132xf32>
    %6 = vector.extract_strided_slice %5 {offsets = [0, 0], sizes = [8, 128], strides = [1, 1]} : vector<8x132xf32> to vector<8x128xf32>
    %7 = vector.extract_strided_slice %5 {offsets = [0, 1], sizes = [8, 128], strides = [1, 1]} : vector<8x132xf32> to vector<8x128xf32>
    %8 = vector.extract_strided_slice %5 {offsets = [0, 2], sizes = [8, 128], strides = [1, 1]} : vector<8x132xf32> to vector<8x128xf32>
    %9 = vector.extract_strided_slice %5 {offsets = [0, 3], sizes = [8, 128], strides = [1, 1]} : vector<8x132xf32> to vector<8x128xf32>
    %10 = vector.extract_strided_slice %5 {offsets = [0, 4], sizes = [8, 128], strides = [1, 1]} : vector<8x132xf32> to vector<8x128xf32>
    %11 = tpu.concatenate %6, %7, %8, %9, %10 in 0 : vector<8x128xf32>, vector<8x128xf32>, vector<8x128xf32>, vector<8x128xf32>, vector<8x128xf32> -> vector<40x128xf32>
    %cst_6 = arith.constant dense<0.000000e+00> : vector<16x128xf32>
    %12 = tpu.matmul %2, %11, %cst_6 {dimension_numbers = #tpu.dot_dimension_numbers<[1], [0], [0], [1], [0, 0, 1, 1], [], []>} : vector<16x40xf32>, vector<40x128xf32>, vector<16x128xf32> -> vector<16x128xf32>
    %13 = vector.broadcast %3 : vector<16x1xf32> to vector<16x128xf32>
    %14 = arith.addf %12, %13 : vector<16x128xf32>
    %cst_7 = arith.constant 0.000000e+00 : f32
    %15 = vector.broadcast %cst_7 : f32 to vector<16x128xf32>
    %16 = arith.cmpf oge, %14, %15 : vector<16x128xf32>
    %cst_8 = arith.constant 2.000000e-01 : f32
    %17 = vector.broadcast %cst_8 : f32 to vector<16x128xf32>
    %18 = arith.mulf %17, %14 : vector<16x128xf32>
    %19 = arith.select %16, %14, %18 : vector<16x128xi1>, vector<16x128xf32>
    %c0_9 = arith.constant 0 : index
    %c0_10 = arith.constant 0 : index
    %20 = vector.load %arg4[%c0_9, %c0_10] : memref<16x80xf32, #tpu.memory_space<vmem>>, vector<16x80xf32>
    %c0_11 = arith.constant 0 : index
    %c0_12 = arith.constant 0 : index
    %21 = vector.load %arg5[%c0_11, %c0_12] : memref<16x1xf32, #tpu.memory_space<vmem>>, vector<16x1xf32>
    %cst_13 = arith.constant 0.000000e+00 : f32
    %22 = vector.broadcast %cst_13 : f32 to vector<16x2xf32>
    %23 = tpu.concatenate %22, %19, %22 in 1 : vector<16x2xf32>, vector<16x128xf32>, vector<16x2xf32> -> vector<16x132xf32>
    %24 = vector.extract_strided_slice %23 {offsets = [0, 0], sizes = [16, 128], strides = [1, 1]} : vector<16x132xf32> to vector<16x128xf32>
    %25 = vector.extract_strided_slice %23 {offsets = [0, 1], sizes = [16, 128], strides = [1, 1]} : vector<16x132xf32> to vector<16x128xf32>
    %26 = vector.extract_strided_slice %23 {offsets = [0, 2], sizes = [16, 128], strides = [1, 1]} : vector<16x132xf32> to vector<16x128xf32>
    %27 = vector.extract_strided_slice %23 {offsets = [0, 3], sizes = [16, 128], strides = [1, 1]} : vector<16x132xf32> to vector<16x128xf32>
    %28 = vector.extract_strided_slice %23 {offsets = [0, 4], sizes = [16, 128], strides = [1, 1]} : vector<16x132xf32> to vector<16x128xf32>
    %29 = tpu.concatenate %24, %25, %26, %27, %28 in 0 : vector<16x128xf32>, vector<16x128xf32>, vector<16x128xf32>, vector<16x128xf32>, vector<16x128xf32> -> vector<80x128xf32>
    %cst_14 = arith.constant dense<0.000000e+00> : vector<16x128xf32>
    %30 = tpu.matmul %20, %29, %cst_14 {dimension_numbers = #tpu.dot_dimension_numbers<[1], [0], [0], [1], [0, 0, 1, 1], [], []>} : vector<16x80xf32>, vector<80x128xf32>, vector<16x128xf32> -> vector<16x128xf32>
    %31 = vector.broadcast %21 : vector<16x1xf32> to vector<16x128xf32>
    %32 = arith.addf %30, %31 : vector<16x128xf32>
    %cst_15 = arith.constant 0.000000e+00 : f32
    %33 = vector.broadcast %cst_15 : f32 to vector<16x128xf32>
    %34 = arith.cmpf oge, %32, %33 : vector<16x128xf32>
    %cst_16 = arith.constant 2.000000e-01 : f32
    %35 = vector.broadcast %cst_16 : f32 to vector<16x128xf32>
    %36 = arith.mulf %35, %32 : vector<16x128xf32>
    %37 = arith.select %34, %32, %36 : vector<16x128xi1>, vector<16x128xf32>
    %c0_17 = arith.constant 0 : index
    %c0_18 = arith.constant 0 : index
    %38 = vector.load %arg6[%c0_17, %c0_18] : memref<8x48xf32, #tpu.memory_space<vmem>>, vector<8x48xf32>
    %c0_19 = arith.constant 0 : index
    %c0_20 = arith.constant 0 : index
    %39 = vector.load %arg7[%c0_19, %c0_20] : memref<8x1xf32, #tpu.memory_space<vmem>>, vector<8x1xf32>
    %cst_21 = arith.constant 0.000000e+00 : f32
    %40 = vector.broadcast %cst_21 : f32 to vector<16x1xf32>
    %41 = tpu.concatenate %40, %37, %40 in 1 : vector<16x1xf32>, vector<16x128xf32>, vector<16x1xf32> -> vector<16x130xf32>
    %42 = vector.extract_strided_slice %41 {offsets = [0, 0], sizes = [16, 128], strides = [1, 1]} : vector<16x130xf32> to vector<16x128xf32>
    %43 = vector.extract_strided_slice %41 {offsets = [0, 1], sizes = [16, 128], strides = [1, 1]} : vector<16x130xf32> to vector<16x128xf32>
    %44 = vector.extract_strided_slice %41 {offsets = [0, 2], sizes = [16, 128], strides = [1, 1]} : vector<16x130xf32> to vector<16x128xf32>
    %45 = tpu.concatenate %42, %43, %44 in 0 : vector<16x128xf32>, vector<16x128xf32>, vector<16x128xf32> -> vector<48x128xf32>
    %cst_22 = arith.constant dense<0.000000e+00> : vector<8x128xf32>
    %46 = tpu.matmul %38, %45, %cst_22 {dimension_numbers = #tpu.dot_dimension_numbers<[1], [0], [0], [1], [0, 0, 1, 1], [], []>} : vector<8x48xf32>, vector<48x128xf32>, vector<8x128xf32> -> vector<8x128xf32>
    %47 = vector.broadcast %39 : vector<8x1xf32> to vector<8x128xf32>
    %48 = arith.addf %46, %47 : vector<8x128xf32>
    %cst_23 = arith.constant 0.000000e+00 : f32
    %49 = vector.broadcast %cst_23 : f32 to vector<8x128xf32>
    %50 = arith.cmpf oge, %48, %49 : vector<8x128xf32>
    %cst_24 = arith.constant 2.000000e-01 : f32
    %51 = vector.broadcast %cst_24 : f32 to vector<8x128xf32>
    %52 = arith.mulf %51, %48 : vector<8x128xf32>
    %53 = arith.select %50, %48, %52 : vector<8x128xi1>, vector<8x128xf32>
    %c0_25 = arith.constant 0 : index
    %c0_26 = arith.constant 0 : index
    %54 = vector.load %arg8[%c0_25, %c0_26] : memref<8x8xf32, #tpu.memory_space<vmem>>, vector<8x8xf32>
    %cst_27 = arith.constant dense<0.000000e+00> : vector<8x128xf32>
    %55 = tpu.matmul %54, %1, %cst_27 {dimension_numbers = #tpu.dot_dimension_numbers<[1], [0], [0], [1], [0, 0, 1, 1], [], []>} : vector<8x8xf32>, vector<8x128xf32>, vector<8x128xf32> -> vector<8x128xf32>
    %c0_28 = arith.constant 0 : index
    %c0_29 = arith.constant 0 : index
    %56 = vector.load %arg9[%c0_28, %c0_29] : memref<8x1xf32, #tpu.memory_space<vmem>>, vector<8x1xf32>
    %57 = vector.broadcast %56 : vector<8x1xf32> to vector<8x128xf32>
    %58 = arith.addf %55, %57 : vector<8x128xf32>
    %59 = arith.addf %53, %58 : vector<8x128xf32>
    %cst_30 = arith.constant 0.000000e+00 : f32
    %60 = vector.broadcast %cst_30 : f32 to vector<8x128xf32>
    %61 = arith.cmpf oge, %59, %60 : vector<8x128xf32>
    %cst_31 = arith.constant 0.00999999977 : f32
    %62 = vector.broadcast %cst_31 : f32 to vector<8x128xf32>
    %63 = arith.mulf %62, %59 : vector<8x128xf32>
    %64 = arith.select %61, %59, %63 : vector<8x128xi1>, vector<8x128xf32>
    %c0_32 = arith.constant 0 : index
    %c0_33 = arith.constant 0 : index
    %c0_34 = arith.constant 0 : index
    %65 = vector.load %arg10[%c0_32, %c0_33, %c0_34] : memref<1x8x128xf32, #tpu.memory_space<vmem>>, vector<1x8x128xf32>
    %66 = vector.shape_cast %65 : vector<1x8x128xf32> to vector<8x128xf32>
    %67 = vector.shape_cast %64 : vector<8x128xf32> to vector<1x8x128xf32>
    tpu.vector_store %arg10[%c0_32, %c0_33, %c0_34], %67 {strides = array<i32>} : memref<1x8x128xf32, #tpu.memory_space<vmem>>, vector<1x8x128xf32>,
    return
  }
  func.func @transform_0(%arg0: i32) -> (i32, i32, i32) {
    %c0_i32 = arith.constant 0 : i32
    %c0_i32_0 = arith.constant 0 : i32
    %c0_i32_1 = arith.constant 0 : i32
    return %arg0, %c0_i32, %c0_i32_0 : i32, i32, i32
  }
  func.func @transform_1(%arg0: i32) -> (i32, i32) {
    %c0_i32 = arith.constant 0 : i32
    %c0_i32_0 = arith.constant 0 : i32
    %c0_i32_1 = arith.constant 0 : i32
    return %c0_i32, %c0_i32_0 : i32, i32
  }
  func.func @transform_2(%arg0: i32) -> (i32, i32) {
    %c0_i32 = arith.constant 0 : i32
    %c0_i32_0 = arith.constant 0 : i32
    %c0_i32_1 = arith.constant 0 : i32
    return %c0_i32, %c0_i32_0 : i32, i32
  }
  func.func @transform_3(%arg0: i32) -> (i32, i32) {
    %c0_i32 = arith.constant 0 : i32
    %c0_i32_0 = arith.constant 0 : i32
    %c0_i32_1 = arith.constant 0 : i32
    return %c0_i32, %c0_i32_0 : i32, i32
  }
  func.func @transform_4(%arg0: i32) -> (i32, i32) {
    %c0_i32 = arith.constant 0 : i32
    %c0_i32_0 = arith.constant 0 : i32
    %c0_i32_1 = arith.constant 0 : i32
    return %c0_i32, %c0_i32_0 : i32, i32
  }
  func.func @transform_5(%arg0: i32) -> (i32, i32) {
    %c0_i32 = arith.constant 0 : i32
    %c0_i32_0 = arith.constant 0 : i32
    %c0_i32_1 = arith.constant 0 : i32
    return %c0_i32, %c0_i32_0 : i32, i32
  }
  func.func @transform_6(%arg0: i32) -> (i32, i32) {
    %c0_i32 = arith.constant 0 : i32
    %c0_i32_0 = arith.constant 0 : i32
    %c0_i32_1 = arith.constant 0 : i32
    return %c0_i32, %c0_i32_0 : i32, i32
  }
  func.func @transform_7(%arg0: i32) -> (i32, i32) {
    %c0_i32 = arith.constant 0 : i32
    %c0_i32_0 = arith.constant 0 : i32
    %c0_i32_1 = arith.constant 0 : i32
    return %c0_i32, %c0_i32_0 : i32, i32
  }
  func.func @transform_8(%arg0: i32) -> (i32, i32) {
    %c0_i32 = arith.constant 0 : i32
    %c0_i32_0 = arith.constant 0 : i32
    %c0_i32_1 = arith.constant 0 : i32
    return %c0_i32, %c0_i32_0 : i32, i32
  }
  func.func @transform_9(%arg0: i32) -> (i32, i32, i32) {
    %c0_i32 = arith.constant 0 : i32
    %c0_i32_0 = arith.constant 0 : i32
    %c0_i32_1 = arith.constant 0 : i32
    return %arg0, %c0_i32, %c0_i32_0 : i32, i32, i32
  }
}

</mosaic_0001>

<llo_original>
// kernel: resnet_block_1d.1
$region0: #{resnet_block_1d.1}
  #allocation0 [shape = 'u32[]', space=smem, size = 0x4, offset = 0x4, fixed_abs, tag = 'smem constant byte address 0x4 - core index']
  #allocation1 [shape = 'u32[144,128]{1,0:T(1,128)}', space=vmem, size = 0x12000, scoped, tag = 'internal scratch']
  %s0 = inlined_call_operand.vmem [shape: f32[2,8,128], index: 0, kind: input, shape index: {}]
  %s1 = inlined_call_operand.vmem [shape: f32[16,40], index: 1, kind: input, shape index: {}]
  %s2 = inlined_call_operand.vmem [shape: f32[16,1], index: 2, kind: input, shape index: {}]
  %s3 = inlined_call_operand.vmem [shape: f32[16,80], index: 3, kind: input, shape index: {}]
  %s4 = inlined_call_operand.vmem [shape: f32[16,1], index: 4, kind: input, shape index: {}]
  %s5 = inlined_call_operand.vmem [shape: f32[8,48], index: 5, kind: input, shape index: {}]
  %s6 = inlined_call_operand.vmem [shape: f32[8,1], index: 6, kind: input, shape index: {}]
  %s7 = inlined_call_operand.vmem [shape: f32[8,8], index: 7, kind: input, shape index: {}]
  %s8 = inlined_call_operand.vmem [shape: f32[8,1], index: 8, kind: input, shape index: {}]
  %s9 = inlined_call_operand.hbm [shape: f32[2,8,128], index: 9, kind: output, shape index: {}]
  %s10 = sld [smem:[#allocation0]]
  $region69: #{resnet_block_1d.1} parent=0
    _
  %s12 = ssub.s32 1, %s10
  %s13 = scalar_select 0, %s12, %s10
  $region1: #{resnet_block_1d.1} parent=0
    #allocation2 [shape = 'u8[8192]{0}', space=vmem, size = 0x2000, scoped, tag = 'output window, operand 0']
    #allocation3 [shape = 's32[2]{0}', space=sflag, size = 0x8, scoped, tag = 'scoped memory for resnet_block_1d.1']
    %14 = vsyncpa [#allocation3], 0
    %s15 = scalar_lea.sflag [#allocation3], 1
    %16 = vsyncpa %s15, 0
    loop: start=0, step=1, limit=4
    $region2: #{resnet_block_1d.1} parent=1 // loop_pre_header
      _
    $region3: #{resnet_block_1d.1} parent=1 // loop_header
      %s18 = sphi 0, %s22
      %p19 = scmp.ge.s32.totalorder %s18, 4
      %s28 = sphi 0, %s30
      %s31 = sphi 0, %s28
      %s32 = sphi 0, %s31
      %s48 = sphi 0, %s32
      %s52 = sphi 0, %s52
      %s54 = sphi 0, %s52
      %s55 = sphi 0, %s54
      %s69 = sphi 0, %s55
      %s73 = sphi 0, %s73
      %s75 = sphi 0, %s73
      %s76 = sphi 0, %s75
      %s90 = sphi 0, %s76
      %s94 = sphi 0, %s94
      %s96 = sphi 0, %s94
      %s97 = sphi 0, %s96
      %s111 = sphi 0, %s97
      %s115 = sphi 0, %s115
      %s117 = sphi 0, %s115
      %s118 = sphi 0, %s117
      %s132 = sphi 0, %s118
      %s136 = sphi 0, %s136
      %s138 = sphi 0, %s136
      %s139 = sphi 0, %s138
      %s153 = sphi 0, %s139
      %s157 = sphi 0, %s157
      %s159 = sphi 0, %s157
      %s160 = sphi 0, %s159
      %s174 = sphi 0, %s160
      %s178 = sphi 0, %s178
      %s180 = sphi 0, %s178
      %s181 = sphi 0, %s180
      %s195 = sphi 0, %s181
      %s199 = sphi 0, %s199
      %s201 = sphi 0, %s199
      %s202 = sphi 0, %s201
      %s216 = sphi 0, %s202
      %s222 = sphi 0, %s224
      %s225 = sphi 0, %s222
      %s226 = sphi 0, %s225
      %s242 = sphi 0, %s226
    $region4: #{resnet_block_1d.1} parent=1 // loop_header_branch
      %21 = sbr.rel (%p19) target = $region8
    $region5: #{resnet_block_1d.1} parent=1 // loop_body
      %s23 = ssub.s32 %s18, 1
      %s24 = ssub.s32 %s18, 2
      %s25 = sadd.s32 %s18, 1
      %s26 = ssub.s32 %s18, %s25
      %p27 = scmp.eq.s32.totalorder %s26, 0
      %s29 = sadd.s32 %s28, 1
      %s30 = scalar_select %p27, %s28, %s29
      %p33 = pneg %p27
      %p34 = scmp.eq.s32.totalorder %s18, 1
      %p35 = por %p33, %p34
      %p36 = scmp.ne.s32.totalorder %s28, %s31
      %p37 = scmp.eq.s32.totalorder %s18, 0
      %p38 = por %p36, %p37
      %p39 = scmp.ne.s32.totalorder %s28, %s31
      %p40 = scmp.eq.s32.totalorder %s23, 1
      %p41 = por %p39, %p40
      %p42 = scmp.ne.s32.totalorder %s31, %s32
      %p43 = scmp.eq.s32.totalorder %s23, 0
      %p44 = por %p42, %p43
      %p45 = scmp.ne.s32.totalorder %s31, %s32
      %p46 = scmp.eq.s32.totalorder %s24, 1
      %p47 = por %p45, %p46
      %p49 = scmp.ne.s32.totalorder %s32, %s48
      %p50 = scmp.eq.s32.totalorder %s24, 0
      %p51 = por %p49, %p50
      %s53 = sadd.s32 %s52, 1
      %p56 = scmp.eq.s32.totalorder %s18, 1
      %p57 = scmp.ne.s32.totalorder %s52, %s54
      %p58 = scmp.eq.s32.totalorder %s18, 0
      %p59 = por %p57, %p58
      %p60 = scmp.ne.s32.totalorder %s52, %s54
      %p61 = scmp.eq.s32.totalorder %s23, 1
      %p62 = por %p60, %p61
      %p63 = scmp.ne.s32.totalorder %s54, %s55
      %p64 = scmp.eq.s32.totalorder %s23, 0
      %p65 = por %p63, %p64
      %p66 = scmp.ne.s32.totalorder %s54, %s55
      %p67 = scmp.eq.s32.totalorder %s24, 1
      %p68 = por %p66, %p67
      %p70 = scmp.ne.s32.totalorder %s55, %s69
      %p71 = scmp.eq.s32.totalorder %s24, 0
      %p72 = por %p70, %p71
      %s74 = sadd.s32 %s73, 1
      %p77 = scmp.eq.s32.totalorder %s18, 1
      %p78 = scmp.ne.s32.totalorder %s73, %s75
      %p79 = scmp.eq.s32.totalorder %s18, 0
      %p80 = por %p78, %p79
      %p81 = scmp.ne.s32.totalorder %s73, %s75
      %p82 = scmp.eq.s32.totalorder %s23, 1
      %p83 = por %p81, %p82
      %p84 = scmp.ne.s32.totalorder %s75, %s76
      %p85 = scmp.eq.s32.totalorder %s23, 0
      %p86 = por %p84, %p85
      %p87 = scmp.ne.s32.totalorder %s75, %s76
      %p88 = scmp.eq.s32.totalorder %s24, 1
      %p89 = por %p87, %p88
      %p91 = scmp.ne.s32.totalorder %s76, %s90
      %p92 = scmp.eq.s32.totalorder %s24, 0
      %p93 = por %p91, %p92
      %s95 = sadd.s32 %s94, 1
      %p98 = scmp.eq.s32.totalorder %s18, 1
      %p99 = scmp.ne.s32.totalorder %s94, %s96
      %p100 = scmp.eq.s32.totalorder %s18, 0
      %p101 = por %p99, %p100
      %p102 = scmp.ne.s32.totalorder %s94, %s96
      %p103 = scmp.eq.s32.totalorder %s23, 1
      %p104 = por %p102, %p103
      %p105 = scmp.ne.s32.totalorder %s96, %s97
      %p106 = scmp.eq.s32.totalorder %s23, 0
      %p107 = por %p105, %p106
      %p108 = scmp.ne.s32.totalorder %s96, %s97
      %p109 = scmp.eq.s32.totalorder %s24, 1
      %p110 = por %p108, %p109
      %p112 = scmp.ne.s32.totalorder %s97, %s111
      %p113 = scmp.eq.s32.totalorder %s24, 0
      %p114 = por %p112, %p113
      %s116 = sadd.s32 %s115, 1
      %p119 = scmp.eq.s32.totalorder %s18, 1
      %p120 = scmp.ne.s32.totalorder %s115, %s117
      %p121 = scmp.eq.s32.totalorder %s18, 0
      %p122 = por %p120, %p121
      %p123 = scmp.ne.s32.totalorder %s115, %s117
      %p124 = scmp.eq.s32.totalorder %s23, 1
      %p125 = por %p123, %p124
      %p126 = scmp.ne.s32.totalorder %s117, %s118
      %p127 = scmp.eq.s32.totalorder %s23, 0
      %p128 = por %p126, %p127
      %p129 = scmp.ne.s32.totalorder %s117, %s118
      %p130 = scmp.eq.s32.totalorder %s24, 1
      %p131 = por %p129, %p130
      %p133 = scmp.ne.s32.totalorder %s118, %s132
      %p134 = scmp.eq.s32.totalorder %s24, 0
      %p135 = por %p133, %p134
      %s137 = sadd.s32 %s136, 1
      %p140 = scmp.eq.s32.totalorder %s18, 1
      %p141 = scmp.ne.s32.totalorder %s136, %s138
      %p142 = scmp.eq.s32.totalorder %s18, 0
      %p143 = por %p141, %p142
      %p144 = scmp.ne.s32.totalorder %s136, %s138
      %p145 = scmp.eq.s32.totalorder %s23, 1
      %p146 = por %p144, %p145
      %p147 = scmp.ne.s32.totalorder %s138, %s139
      %p148 = scmp.eq.s32.totalorder %s23, 0
      %p149 = por %p147, %p148
      %p150 = scmp.ne.s32.totalorder %s138, %s139
      %p151 = scmp.eq.s32.totalorder %s24, 1
      %p152 = por %p150, %p151
      %p154 = scmp.ne.s32.totalorder %s139, %s153
      %p155 = scmp.eq.s32.totalorder %s24, 0
      %p156 = por %p154, %p155
      %s158 = sadd.s32 %s157, 1
      %p161 = scmp.eq.s32.totalorder %s18, 1
      %p162 = scmp.ne.s32.totalorder %s157, %s159
      %p163 = scmp.eq.s32.totalorder %s18, 0
      %p164 = por %p162, %p163
      %p165 = scmp.ne.s32.totalorder %s157, %s159
      %p166 = scmp.eq.s32.totalorder %s23, 1
      %p167 = por %p165, %p166
      %p168 = scmp.ne.s32.totalorder %s159, %s160
      %p169 = scmp.eq.s32.totalorder %s23, 0
      %p170 = por %p168, %p169
      %p171 = scmp.ne.s32.totalorder %s159, %s160
      %p172 = scmp.eq.s32.totalorder %s24, 1
      %p173 = por %p171, %p172
      %p175 = scmp.ne.s32.totalorder %s160, %s174
      %p176 = scmp.eq.s32.totalorder %s24, 0
      %p177 = por %p175, %p176
      %s179 = sadd.s32 %s178, 1
      %p182 = scmp.eq.s32.totalorder %s18, 1
      %p183 = scmp.ne.s32.totalorder %s178, %s180
      %p184 = scmp.eq.s32.totalorder %s18, 0
      %p185 = por %p183, %p184
      %p186 = scmp.ne.s32.totalorder %s178, %s180
      %p187 = scmp.eq.s32.totalorder %s23, 1
      %p188 = por %p186, %p187
      %p189 = scmp.ne.s32.totalorder %s180, %s181
      %p190 = scmp.eq.s32.totalorder %s23, 0
      %p191 = por %p189, %p190
      %p192 = scmp.ne.s32.totalorder %s180, %s181
      %p193 = scmp.eq.s32.totalorder %s24, 1
      %p194 = por %p192, %p193
      %p196 = scmp.ne.s32.totalorder %s181, %s195
      %p197 = scmp.eq.s32.totalorder %s24, 0
      %p198 = por %p196, %p197
      %s200 = sadd.s32 %s199, 1
      %p203 = scmp.eq.s32.totalorder %s18, 1
      %p204 = scmp.ne.s32.totalorder %s199, %s201
      %p205 = scmp.eq.s32.totalorder %s18, 0
      %p206 = por %p204, %p205
      %p207 = scmp.ne.s32.totalorder %s199, %s201
      %p208 = scmp.eq.s32.totalorder %s23, 1
      %p209 = por %p207, %p208
      %p210 = scmp.ne.s32.totalorder %s201, %s202
      %p211 = scmp.eq.s32.totalorder %s23, 0
      %p212 = por %p210, %p211
      %p213 = scmp.ne.s32.totalorder %s201, %s202
      %p214 = scmp.eq.s32.totalorder %s24, 1
      %p215 = por %p213, %p214
      %p217 = scmp.ne.s32.totalorder %s202, %s216
      %p218 = scmp.eq.s32.totalorder %s24, 0
      %p219 = por %p217, %p218
      %s220 = ssub.s32 %s18, %s25
      %p221 = scmp.eq.s32.totalorder %s220, 0
      %s223 = sadd.s32 %s222, 1
      %s224 = scalar_select %p221, %s222, %s223
      %p227 = pneg %p221
      %p228 = scmp.eq.s32.totalorder %s18, 1
      %p229 = por %p227, %p228
      %p230 = scmp.ne.s32.totalorder %s222, %s225
      %p231 = scmp.eq.s32.totalorder %s18, 0
      %p232 = por %p230, %p231
      %p233 = scmp.ne.s32.totalorder %s222, %s225
      %p234 = scmp.eq.s32.totalorder %s23, 1
      %p235 = por %p233, %p234
      %p236 = scmp.ne.s32.totalorder %s225, %s226
      %p237 = scmp.eq.s32.totalorder %s23, 0
      %p238 = por %p236, %p237
      %p239 = scmp.ne.s32.totalorder %s225, %s226
      %p240 = scmp.eq.s32.totalorder %s24, 1
      %p241 = por %p239, %p240
      %p243 = scmp.ne.s32.totalorder %s226, %s242
      %p244 = scmp.eq.s32.totalorder %s24, 0
      %p245 = por %p243, %p244
      %p246 = scmp.le.s32.totalorder 1, %s18
      %p247 = scmp.lt.s32.totalorder %s18, 3
      %p248 = pnand %p246, %p247
      %p249 = pneg %p248
      // Predicated region
      $region9: #{resnet_block_1d.1} parent=5 // pred_check
        _
      $region10: #{resnet_block_1d.1} parent=5 // pred_check_branch
        %251 = sbr.rel (%p248) target = $region12
      $region11: #{resnet_block_1d.1} parent=5 // pred_region
        %s252 = ssub.s32 %s18, 1
        // Predicated region
        $region13: #{resnet_block_1d.1} parent=11 // pred_check
          %p253 = pneg %p65
        $region14: #{resnet_block_1d.1} parent=11 // pred_check_branch
          %255 = sbr.rel (%p253) target = $region16
        $region15: #{resnet_block_1d.1} parent=11 // pred_region
          _
        $region16: #{resnet_block_1d.1} parent=11 // pred_fallthru
          _
        // Predicated region
        $region17: #{resnet_block_1d.1} parent=11 // pred_check
          %p256 = pneg %p86
        $region18: #{resnet_block_1d.1} parent=11 // pred_check_branch
          %258 = sbr.rel (%p256) target = $region20
        $region19: #{resnet_block_1d.1} parent=11 // pred_region
          _
        $region20: #{resnet_block_1d.1} parent=11 // pred_fallthru
          _
        // Predicated region
        $region21: #{resnet_block_1d.1} parent=11 // pred_check
          %p259 = pneg %p107
        $region22: #{resnet_block_1d.1} parent=11 // pred_check_branch
          %261 = sbr.rel (%p259) target = $region24
        $region23: #{resnet_block_1d.1} parent=11 // pred_region
          _
        $region24: #{resnet_block_1d.1} parent=11 // pred_fallthru
          _
        // Predicated region
        $region25: #{resnet_block_1d.1} parent=11 // pred_check
          %p262 = pneg %p128
        $region26: #{resnet_block_1d.1} parent=11 // pred_check_branch
          %264 = sbr.rel (%p262) target = $region28
        $region27: #{resnet_block_1d.1} parent=11 // pred_region
          _
        $region28: #{resnet_block_1d.1} parent=11 // pred_fallthru
          _
        // Predicated region
        $region29: #{resnet_block_1d.1} parent=11 // pred_check
          %p265 = pneg %p149
        $region30: #{resnet_block_1d.1} parent=11 // pred_check_branch
          %267 = sbr.rel (%p265) target = $region32
        $region31: #{resnet_block_1d.1} parent=11 // pred_region
          _
        $region32: #{resnet_block_1d.1} parent=11 // pred_fallthru
          _
        // Predicated region
        $region33: #{resnet_block_1d.1} parent=11 // pred_check
          %p268 = pneg %p170
        $region34: #{resnet_block_1d.1} parent=11 // pred_check_branch
          %270 = sbr.rel (%p268) target = $region36
        $region35: #{resnet_block_1d.1} parent=11 // pred_region
          _
        $region36: #{resnet_block_1d.1} parent=11 // pred_fallthru
          _
        // Predicated region
        $region37: #{resnet_block_1d.1} parent=11 // pred_check
          %p271 = pneg %p191
        $region38: #{resnet_block_1d.1} parent=11 // pred_check_branch
          %273 = sbr.rel (%p271) target = $region40
        $region39: #{resnet_block_1d.1} parent=11 // pred_region
          _
        $region40: #{resnet_block_1d.1} parent=11 // pred_fallthru
          _
        // Predicated region
        $region41: #{resnet_block_1d.1} parent=11 // pred_check
          %p274 = pneg %p212
        $region42: #{resnet_block_1d.1} parent=11 // pred_check_branch
          %276 = sbr.rel (%p274) target = $region44
        $region43: #{resnet_block_1d.1} parent=11 // pred_region
          _
        $region44: #{resnet_block_1d.1} parent=11 // pred_fallthru
          _
      $region12: #{resnet_block_1d.1} parent=5 // pred_fallthru
        _
      %p277 = scmp.lt.s32.totalorder %s18, 2
      // Predicated region
      $region45: #{resnet_block_1d.1} parent=5 // pred_check
        %p278 = pneg %p277
      $region46: #{resnet_block_1d.1} parent=5 // pred_check_branch
        %280 = sbr.rel (%p278) target = $region48
      $region47: #{resnet_block_1d.1} parent=5 // pred_region
        // Predicated region
        $region49: #{resnet_block_1d.1} parent=47 // pred_check
          %p281 = pneg %p38
        $region50: #{resnet_block_1d.1} parent=47 // pred_check_branch
          %283 = sbr.rel (%p281) target = $region52
        $region51: #{resnet_block_1d.1} parent=47 // pred_region
          %p284 = scmp.lt.s32.totalorder %s18, 1
          %s285 = scalar_select %p284, %s18, 1
          %s286 = smul.addr %s285, 8
          %s287 = scalar_lea.vmem %s0, %s286
        $region52: #{resnet_block_1d.1} parent=47 // pred_fallthru
          _
      $region48: #{resnet_block_1d.1} parent=5 // pred_fallthru
        _
      %p288 = scmp.le.s32.totalorder 1, %s18
      %p289 = scmp.lt.s32.totalorder %s18, 3
      %p290 = pnand %p288, %p289
      %p291 = pneg %p290
      // Predicated region
      $region53: #{resnet_block_1d.1} parent=5 // pred_check
        _
      $region54: #{resnet_block_1d.1} parent=5 // pred_check_branch
        %293 = sbr.rel (%p290) target = $region56
      $region55: #{resnet_block_1d.1} parent=5 // pred_region
        %s294 = ssub.s32 %s18, 1
        %p295 = scmp.lt.s32.totalorder %s23, 1
        %s296 = scalar_select %p295, %s23, 1
        %s297 = smul.addr %s296, 8
        %s298 = scalar_lea.vmem %s0, %s297
        %p299 = pneg %p44
        %p300 = pneg %p41
        %p301 = pneg %p65
        %p302 = pneg %p62
        %p303 = pneg %p86
        %p304 = pneg %p83
        %p305 = pneg %p107
        %p306 = pneg %p104
        %p307 = pneg %p128
        %p308 = pneg %p125
        %p309 = pneg %p149
        %p310 = pneg %p146
        %p311 = pneg %p170
        %p312 = pneg %p167
        %p313 = pneg %p191
        %p314 = pneg %p188
        %p315 = pneg %p212
        %p316 = pneg %p209
        %p317 = pneg %p238
        %p318 = pneg %p235
        %s319 = sand.u32 %s225, 1
        %s320 = scalar_lea.sflag [#allocation3], %s319
        %s321 = sand.u32 %s225, 1
        %s322 = smul.addr %s321, 8
        %s323 = scalar_lea.vmem [#allocation2], %s322
        %p324 = scmp.lt.s32.totalorder %s23, 1
        %s325 = scalar_select %p324, %s23, 1
        %s326 = smul.addr %s325, 8
        %s327 = scalar_lea.vmem %s0, %s326
        %v328 = vld [vmem:[%s327] sm:$0xff]
        %v329 = vld [vmem:[%s1] sm:$0xff]
        %v330 = vld [vmem:[%s1 + $0x8] sm:$0xff]
        %v331 = vld [vmem:[%s2] sm:$0xff]
        %v332 = vld [vmem:[%s2 + $0x8] sm:$0xff]
        %334 = vrot.lane.b32.xlu0 %v328, 2
        %v335 = vpop.permute.xlu0 %334
        %vm337 = vcmask 15360
        %v338 = vsel %vm337, 0.0, %v335
        %v339 = vsel %vm337, %v335, 0.0
        %342 = vrot.lane.b32.xlu0 %v338, 127
        %v343 = vpop.permute.xlu0 %342
        %344 = vrot.lane.b32.xlu0 %v339, 127
        %v345 = vpop.permute.xlu0 %344
        %vm346 = vcmask 1039360
        %v347 = vsel %vm346, %v343, %v345
        %349 = vrot.lane.b32.xlu0 %v338, 126
        %v350 = vpop.permute.xlu0 %349
        %351 = vrot.lane.b32.xlu0 %v339, 126
        %v352 = vpop.permute.xlu0 %351
        %vm353 = vcmask 1031168
        %v354 = vsel %vm353, %v350, %v352
        %356 = vrot.lane.b32.xlu0 %v338, 125
        %v357 = vpop.permute.xlu0 %356
        %358 = vrot.lane.b32.xlu0 %v339, 125
        %v359 = vpop.permute.xlu0 %358
        %vm360 = vcmask 1022976
        %v361 = vsel %vm360, %v357, %v359
        %363 = vrot.lane.b32.xlu0 %v338, 124
        %v364 = vpop.permute.xlu0 %363
        %365 = vrot.lane.b32.xlu0 %v339, 124
        %v366 = vpop.permute.xlu0 %365
        %vm367 = vcmask 1014784
        %v368 = vsel %vm367, %v364, %v366
        %371 = vset.pattern.permute.xlu0 0
        %372 = vperm.xlu0 %371, %v331
        %v373 = vpop.permute.xlu0 %372
        %376 = vset.pattern.permute.xlu0 0
        %377 = vperm.xlu0 %376, %v332
        %v378 = vpop.permute.xlu0 %377
        %vm380 = vcmask 326656
        %v382 = vsel %vm380, %v329, 0
        %v385 = vsel %vm380, %v330, 0
        %387 = vmatprep.subr.mxu0 0.0
        %388 = vmatpush1.msra.mxu0 %v338
        %389 = vmatprep.subr.mxu0 0.0
        %390 = vmatpush1.msra.mxu0 %v347
        %391 = vmatprep.subr.mxu0 0.0
        %392 = vmatpush1.msra.mxu0 %v354
        %393 = vmatprep.subr.mxu0 0.0
        %394 = vmatpush1.msra.mxu0 %v361
        %395 = vmatprep.subr.mxu0 0.0
        %396 = vmatpush1.msra.mxu0 %v368
        %397 = vmatprep.subr.mxu0 0.0
        %398 = vmatpush1.msra.mxu0 0.0
        %399 = vmatprep.subr.mxu0 0.0
        %400 = vmatpush1.msra.mxu0 0.0
        %401 = vmatprep.subr.mxu0 0.0
        %402 = vmatpush1.msra.mxu0 0.0
        %403 = vmatprep.subr.mxu0 0.0
        %404 = vmatpush1.msra.mxu0 0.0
        %405 = vmatprep.subr.mxu0 0.0
        %406 = vmatpush1.msra.mxu0 0.0
        %407 = vmatprep.subr.mxu0 0.0
        %408 = vmatpush1.msra.mxu0 0.0
        %409 = vmatprep.subr.mxu0 0.0
        %410 = vmatpush1.msra.mxu0 0.0
        %411 = vmatprep.subr.mxu0 0.0
        %412 = vmatpush1.msra.mxu0 0.0
        %413 = vmatprep.subr.mxu0 0.0
        %414 = vmatpush1.msra.mxu0 0.0
        %415 = vmatprep.subr.mxu0 0.0
        %416 = vmatpush1.msra.mxu0 0.0
        %417 = vmatprep.subr.mxu0 0.0
        %418 = vmatpush1.msra.mxu0 0.0
        %419 = vmatprep.subr.mxu0 0.0
        %420 = vmatpush1.msra.mxu0 0.0
        %421 = vmatprep.subr.mxu0 0.0
        %422 = vmatpush1.msra.mxu0 0.0
        %423 = vmatprep.subr.mxu0 0.0
        %424 = vmatpush1.msra.mxu0 0.0
        %425 = vmatprep.subr.mxu0 0.0
        %426 = vmatpush1.msra.mxu0 0.0
        %427 = vmatprep.subr.mxu0 0.0
        %428 = vmatpush1.msra.mxu0 0.0
        %429 = vmatprep.subr.mxu0 0.0
        %430 = vmatpush1.msra.mxu0 0.0
        %431 = vmatprep.subr.mxu0 0.0
        %432 = vmatpush1.msra.mxu0 0.0
        %433 = vmatprep.subr.mxu0 0.0
        %434 = vmatpush1.msra.mxu0 0.0
        %435 = vmatprep.subr.mxu0 0.0
        %436 = vmatpush1.msra.mxu0 0.0
        %437 = vmatprep.subr.mxu0 0.0
        %438 = vmatpush1.msra.mxu0 0.0
        %439 = vmatprep.subr.mxu0 0.0
        %440 = vmatpush1.msra.mxu0 0.0
        %441 = vmatprep.subr.mxu0 0.0
        %442 = vmatpush1.msra.mxu0 0.0
        %443 = vmatprep.subr.mxu0 0.0
        %444 = vmatpush1.msra.mxu0 0.0
        %445 = vmatprep.subr.mxu0 0.0
        %446 = vmatpush1.msra.mxu0 0.0
        %447 = vmatprep.subr.mxu0 0.0
        %448 = vmatpush1.msra.mxu0 0.0
        %449 = vmatprep.subr.mxu0 0.0
        %450 = vmatpush1.msra.mxu0 0.0
        %451 = vmatprep.mubr.f32.mxu0 0.0
        %452 = vmatmul.mubr.f32.gmra.mrb[0].mxu0 %v382
        %v453 = vpop.f32.mrb[0].mxu0
        %v454 = vadd.f32 %v373, %v453
        %v455 = vpop.f32.mrb[0].mxu0
        %456 = vmatprep.mubr.f32.mxu0 0.0
        %457 = vmatmul.mubr.f32.gmra.mrb[0].mxu0 %v385
        %v458 = vpop.f32.mrb[0].mxu0
        %v459 = vadd.f32 %v378, %v458
        %v460 = vpop.f32.mrb[0].mxu0
        %461 = vdwg.mxu0
        %vm462 = vcmp.ge.f32.partialorder %v454, 0.0
        %vm463 = vcmp.ge.f32.partialorder %v459, 0.0
        %v464 = vmul.f32 %v454, 0.2
        %v465 = vmul.f32 %v459, 0.2
        %v466 = vsel %vm462, %v454, %v464
        %v467 = vsel %vm463, %v459, %v465
        %v468 = vld [vmem:[%s3] sm:$0xff]
        %v469 = vld [vmem:[%s3 + $0x8] sm:$0xff]
        %v470 = vld [vmem:[%s4] sm:$0xff]
        %v471 = vld [vmem:[%s4 + $0x8] sm:$0xff]
        %474 = vrot.lane.b32.xlu0 %v466, 2
        %v475 = vpop.permute.xlu0 %474
        %476 = vrot.lane.b32.xlu0 %v467, 2
        %v477 = vpop.permute.xlu0 %476
        %v480 = vsel %vm337, 0.0, %v475
        %v481 = vsel %vm337, 0.0, %v477
        %v482 = vsel %vm337, %v475, 0.0
        %v483 = vsel %vm337, %v477, 0.0
        %488 = vrot.lane.b32.xlu0 %v480, 127
        %v489 = vpop.permute.xlu0 %488
        %490 = vrot.lane.b32.xlu0 %v482, 127
        %v491 = vpop.permute.xlu0 %490
        %492 = vrot.lane.b32.xlu0 %v481, 127
        %v493 = vpop.permute.xlu0 %492
        %494 = vrot.lane.b32.xlu0 %v483, 127
        %v495 = vpop.permute.xlu0 %494
        %v496 = vsel %vm346, %v489, %v491
        %v497 = vsel %vm346, %v493, %v495
        %500 = vrot.lane.b32.xlu0 %v480, 126
        %v501 = vpop.permute.xlu0 %500
        %502 = vrot.lane.b32.xlu0 %v482, 126
        %v503 = vpop.permute.xlu0 %502
        %504 = vrot.lane.b32.xlu0 %v481, 126
        %v505 = vpop.permute.xlu0 %504
        %506 = vrot.lane.b32.xlu0 %v483, 126
        %v507 = vpop.permute.xlu0 %506
        %v508 = vsel %vm353, %v501, %v503
        %v509 = vsel %vm353, %v505, %v507
        %512 = vrot.lane.b32.xlu0 %v480, 125
        %v513 = vpop.permute.xlu0 %512
        %514 = vrot.lane.b32.xlu0 %v482, 125
        %v515 = vpop.permute.xlu0 %514
        %516 = vrot.lane.b32.xlu0 %v481, 125
        %v517 = vpop.permute.xlu0 %516
        %518 = vrot.lane.b32.xlu0 %v483, 125
        %v519 = vpop.permute.xlu0 %518
        %v520 = vsel %vm360, %v513, %v515
        %v521 = vsel %vm360, %v517, %v519
        %524 = vrot.lane.b32.xlu0 %v480, 124
        %v525 = vpop.permute.xlu0 %524
        %526 = vrot.lane.b32.xlu0 %v482, 124
        %v527 = vpop.permute.xlu0 %526
        %528 = vrot.lane.b32.xlu0 %v481, 124
        %v529 = vpop.permute.xlu0 %528
        %530 = vrot.lane.b32.xlu0 %v483, 124
        %v531 = vpop.permute.xlu0 %530
        %v532 = vsel %vm367, %v525, %v527
        %v533 = vsel %vm367, %v529, %v531
        %537 = vset.pattern.permute.xlu0 0
        %538 = vperm.xlu0 %537, %v470
        %v539 = vpop.permute.xlu0 %538
        %542 = vset.pattern.permute.xlu0 0
        %543 = vperm.xlu0 %542, %v471
        %v544 = vpop.permute.xlu0 %543
        %vm546 = vcmask 654336
        %v548 = vsel %vm546, %v468, 0
        %v551 = vsel %vm546, %v469, 0
        %553 = vmatprep.subr.mxu0 0.0
        %554 = vmatpush1.msra.mxu0 %v480
        %555 = vmatprep.subr.mxu0 0.0
        %556 = vmatpush1.msra.mxu0 %v481
        %557 = vmatprep.subr.mxu0 0.0
        %558 = vmatpush1.msra.mxu0 %v496
        %559 = vmatprep.subr.mxu0 0.0
        %560 = vmatpush1.msra.mxu0 %v497
        %561 = vmatprep.subr.mxu0 0.0
        %562 = vmatpush1.msra.mxu0 %v508
        %563 = vmatprep.subr.mxu0 0.0
        %564 = vmatpush1.msra.mxu0 %v509
        %565 = vmatprep.subr.mxu0 0.0
        %566 = vmatpush1.msra.mxu0 %v520
        %567 = vmatprep.subr.mxu0 0.0
        %568 = vmatpush1.msra.mxu0 %v521
        %569 = vmatprep.subr.mxu0 0.0
        %570 = vmatpush1.msra.mxu0 %v532
        %571 = vmatprep.subr.mxu0 0.0
        %572 = vmatpush1.msra.mxu0 %v533
        %573 = vmatprep.subr.mxu0 0.0
        %574 = vmatpush1.msra.mxu0 0.0
        %575 = vmatprep.subr.mxu0 0.0
        %576 = vmatpush1.msra.mxu0 0.0
        %577 = vmatprep.subr.mxu0 0.0
        %578 = vmatpush1.msra.mxu0 0.0
        %579 = vmatprep.subr.mxu0 0.0
        %580 = vmatpush1.msra.mxu0 0.0
        %581 = vmatprep.subr.mxu0 0.0
        %582 = vmatpush1.msra.mxu0 0.0
        %583 = vmatprep.subr.mxu0 0.0
        %584 = vmatpush1.msra.mxu0 0.0
        %585 = vmatprep.subr.mxu0 0.0
        %586 = vmatpush1.msra.mxu0 0.0
        %587 = vmatprep.subr.mxu0 0.0
        %588 = vmatpush1.msra.mxu0 0.0
        %589 = vmatprep.subr.mxu0 0.0
        %590 = vmatpush1.msra.mxu0 0.0
        %591 = vmatprep.subr.mxu0 0.0
        %592 = vmatpush1.msra.mxu0 0.0
        %593 = vmatprep.subr.mxu0 0.0
        %594 = vmatpush1.msra.mxu0 0.0
        %595 = vmatprep.subr.mxu0 0.0
        %596 = vmatpush1.msra.mxu0 0.0
        %597 = vmatprep.subr.mxu0 0.0
        %598 = vmatpush1.msra.mxu0 0.0
        %599 = vmatprep.subr.mxu0 0.0
        %600 = vmatpush1.msra.mxu0 0.0
        %601 = vmatprep.subr.mxu0 0.0
        %602 = vmatpush1.msra.mxu0 0.0
        %603 = vmatprep.subr.mxu0 0.0
        %604 = vmatpush1.msra.mxu0 0.0
        %605 = vmatprep.subr.mxu0 0.0
        %606 = vmatpush1.msra.mxu0 0.0
        %607 = vmatprep.subr.mxu0 0.0
        %608 = vmatpush1.msra.mxu0 0.0
        %609 = vmatprep.subr.mxu0 0.0
        %610 = vmatpush1.msra.mxu0 0.0
        %611 = vmatprep.subr.mxu0 0.0
        %612 = vmatpush1.msra.mxu0 0.0
        %613 = vmatprep.subr.mxu0 0.0
        %614 = vmatpush1.msra.mxu0 0.0
        %615 = vmatprep.subr.mxu0 0.0
        %616 = vmatpush1.msra.mxu0 0.0
        %617 = vmatprep.mubr.f32.mxu0 0.0
        %618 = vmatmul.mubr.f32.gmra.mrb[0].mxu0 %v548
        %v619 = vpop.f32.mrb[0].mxu0
        %v620 = vadd.f32 %v539, %v619
        %v621 = vpop.f32.mrb[0].mxu0
        %622 = vmatprep.mubr.f32.mxu0 0.0
        %623 = vmatmul.mubr.f32.gmra.mrb[0].mxu0 %v551
        %v624 = vpop.f32.mrb[0].mxu0
        %v625 = vadd.f32 %v544, %v624
        %v626 = vpop.f32.mrb[0].mxu0
        %627 = vdwg.mxu0
        %vm628 = vcmp.ge.f32.partialorder %v620, 0.0
        %vm629 = vcmp.ge.f32.partialorder %v625, 0.0
        %v630 = vmul.f32 %v620, 0.2
        %v631 = vmul.f32 %v625, 0.2
        %v632 = vsel %vm628, %v620, %v630
        %v633 = vsel %vm629, %v625, %v631
        %v634 = vld [vmem:[%s5] sm:$0xff]
        %v635 = vld [vmem:[%s6] sm:$0xff]
        %638 = vrot.lane.b32.xlu0 %v632, 1
        %v639 = vpop.permute.xlu0 %638
        %640 = vrot.lane.b32.xlu0 %v633, 1
        %v641 = vpop.permute.xlu0 %640
        %vm644 = vcmask 7168
        %v645 = vsel %vm644, 0.0, %v639
        %v646 = vsel %vm644, 0.0, %v641
        %v647 = vsel %vm644, %v639, 0.0
        %v648 = vsel %vm644, %v641, 0.0
        %653 = vrot.lane.b32.xlu0 %v645, 127
        %v654 = vpop.permute.xlu0 %653
        %655 = vrot.lane.b32.xlu0 %v647, 127
        %v656 = vpop.permute.xlu0 %655
        %657 = vrot.lane.b32.xlu0 %v646, 127
        %v658 = vpop.permute.xlu0 %657
        %659 = vrot.lane.b32.xlu0 %v648, 127
        %v660 = vpop.permute.xlu0 %659
        %v661 = vsel %vm346, %v654, %v656
        %v662 = vsel %vm346, %v658, %v660
        %665 = vrot.lane.b32.xlu0 %v645, 126
        %v666 = vpop.permute.xlu0 %665
        %667 = vrot.lane.b32.xlu0 %v647, 126
        %v668 = vpop.permute.xlu0 %667
        %669 = vrot.lane.b32.xlu0 %v646, 126
        %v670 = vpop.permute.xlu0 %669
        %671 = vrot.lane.b32.xlu0 %v648, 126
        %v672 = vpop.permute.xlu0 %671
        %v673 = vsel %vm353, %v666, %v668
        %v674 = vsel %vm353, %v670, %v672
        %678 = vset.pattern.permute.xlu0 0
        %679 = vperm.xlu0 %678, %v635
        %v680 = vpop.permute.xlu0 %679
        %vm682 = vcmask 392192
        %v684 = vsel %vm682, %v634, 0
        %686 = vmatprep.subr.mxu0 0.0
        %687 = vmatpush1.msra.mxu0 %v645
        %688 = vmatprep.subr.mxu0 0.0
        %689 = vmatpush1.msra.mxu0 %v646
        %690 = vmatprep.subr.mxu0 0.0
        %691 = vmatpush1.msra.mxu0 %v661
        %692 = vmatprep.subr.mxu0 0.0
        %693 = vmatpush1.msra.mxu0 %v662
        %694 = vmatprep.subr.mxu0 0.0
        %695 = vmatpush1.msra.mxu0 %v673
        %696 = vmatprep.subr.mxu0 0.0
        %697 = vmatpush1.msra.mxu0 %v674
        %698 = vmatprep.subr.mxu0 0.0
        %699 = vmatpush1.msra.mxu0 0.0
        %700 = vmatprep.subr.mxu0 0.0
        %701 = vmatpush1.msra.mxu0 0.0
        %702 = vmatprep.subr.mxu0 0.0
        %703 = vmatpush1.msra.mxu0 0.0
        %704 = vmatprep.subr.mxu0 0.0
        %705 = vmatpush1.msra.mxu0 0.0
        %706 = vmatprep.subr.mxu0 0.0
        %707 = vmatpush1.msra.mxu0 0.0
        %708 = vmatprep.subr.mxu0 0.0
        %709 = vmatpush1.msra.mxu0 0.0
        %710 = vmatprep.subr.mxu0 0.0
        %711 = vmatpush1.msra.mxu0 0.0
        %712 = vmatprep.subr.mxu0 0.0
        %713 = vmatpush1.msra.mxu0 0.0
        %714 = vmatprep.subr.mxu0 0.0
        %715 = vmatpush1.msra.mxu0 0.0
        %716 = vmatprep.subr.mxu0 0.0
        %717 = vmatpush1.msra.mxu0 0.0
        %718 = vmatprep.subr.mxu0 0.0
        %719 = vmatpush1.msra.mxu0 0.0
        %720 = vmatprep.subr.mxu0 0.0
        %721 = vmatpush1.msra.mxu0 0.0
        %722 = vmatprep.subr.mxu0 0.0
        %723 = vmatpush1.msra.mxu0 0.0
        %724 = vmatprep.subr.mxu0 0.0
        %725 = vmatpush1.msra.mxu0 0.0
        %726 = vmatprep.subr.mxu0 0.0
        %727 = vmatpush1.msra.mxu0 0.0
        %728 = vmatprep.subr.mxu0 0.0
        %729 = vmatpush1.msra.mxu0 0.0
        %730 = vmatprep.subr.mxu0 0.0
        %731 = vmatpush1.msra.mxu0 0.0
        %732 = vmatprep.subr.mxu0 0.0
        %733 = vmatpush1.msra.mxu0 0.0
        %734 = vmatprep.subr.mxu0 0.0
        %735 = vmatpush1.msra.mxu0 0.0
        %736 = vmatprep.subr.mxu0 0.0
        %737 = vmatpush1.msra.mxu0 0.0
        %738 = vmatprep.subr.mxu0 0.0
        %739 = vmatpush1.msra.mxu0 0.0
        %740 = vmatprep.subr.mxu0 0.0
        %741 = vmatpush1.msra.mxu0 0.0
        %742 = vmatprep.subr.mxu0 0.0
        %743 = vmatpush1.msra.mxu0 0.0
        %744 = vmatprep.subr.mxu0 0.0
        %745 = vmatpush1.msra.mxu0 0.0
        %746 = vmatprep.subr.mxu0 0.0
        %747 = vmatpush1.msra.mxu0 0.0
        %748 = vmatprep.subr.mxu0 0.0
        %749 = vmatpush1.msra.mxu0 0.0
        %750 = vmatprep.mubr.f32.mxu0 0.0
        %751 = vmatmul.mubr.f32.gmra.mrb[0].mxu0 %v684
        %v752 = vpop.f32.mrb[0].mxu0
        %v753 = vadd.f32 %v680, %v752
        %v754 = vpop.f32.mrb[0].mxu0
        %755 = vdwg.mxu0
        %vm756 = vcmp.ge.f32.partialorder %v753, 0.0
        %v757 = vmul.f32 %v753, 0.2
        %v758 = vsel %vm756, %v753, %v757
        %v759 = vld [vmem:[%s7] sm:$0xff]
        %v760 = vld [vmem:[%s8] sm:$0xff]
        %762 = vset.pattern.permute.xlu0 0
        %763 = vperm.xlu0 %762, %v760
        %v764 = vpop.permute.xlu0 %763
        %vm766 = vcmask 64512
        %v768 = vsel %vm766, %v759, 0
        %770 = vmatprep.subr.mxu0 0.0
        %771 = vmatpush1.msra.mxu0 %v328
        %772 = vmatprep.subr.mxu0 0.0
        %773 = vmatpush1.msra.mxu0 0.0
        %774 = vmatprep.subr.mxu0 0.0
        %775 = vmatpush1.msra.mxu0 0.0
        %776 = vmatprep.subr.mxu0 0.0
        %777 = vmatpush1.msra.mxu0 0.0
        %778 = vmatprep.subr.mxu0 0.0
        %779 = vmatpush1.msra.mxu0 0.0
        %780 = vmatprep.subr.mxu0 0.0
        %781 = vmatpush1.msra.mxu0 0.0
        %782 = vmatprep.subr.mxu0 0.0
        %783 = vmatpush1.msra.mxu0 0.0
        %784 = vmatprep.subr.mxu0 0.0
        %785 = vmatpush1.msra.mxu0 0.0
        %786 = vmatprep.subr.mxu0 0.0
        %787 = vmatpush1.msra.mxu0 0.0
        %788 = vmatprep.subr.mxu0 0.0
        %789 = vmatpush1.msra.mxu0 0.0
        %790 = vmatprep.subr.mxu0 0.0
        %791 = vmatpush1.msra.mxu0 0.0
        %792 = vmatprep.subr.mxu0 0.0
        %793 = vmatpush1.msra.mxu0 0.0
        %794 = vmatprep.subr.mxu0 0.0
        %795 = vmatpush1.msra.mxu0 0.0
        %796 = vmatprep.subr.mxu0 0.0
        %797 = vmatpush1.msra.mxu0 0.0
        %798 = vmatprep.subr.mxu0 0.0
        %799 = vmatpush1.msra.mxu0 0.0
        %800 = vmatprep.subr.mxu0 0.0
        %801 = vmatpush1.msra.mxu0 0.0
        %802 = vmatprep.subr.mxu0 0.0
        %803 = vmatpush1.msra.mxu0 0.0
        %804 = vmatprep.subr.mxu0 0.0
        %805 = vmatpush1.msra.mxu0 0.0
        %806 = vmatprep.subr.mxu0 0.0
        %807 = vmatpush1.msra.mxu0 0.0
        %808 = vmatprep.subr.mxu0 0.0
        %809 = vmatpush1.msra.mxu0 0.0
        %810 = vmatprep.subr.mxu0 0.0
        %811 = vmatpush1.msra.mxu0 0.0
        %812 = vmatprep.subr.mxu0 0.0
        %813 = vmatpush1.msra.mxu0 0.0
        %814 = vmatprep.subr.mxu0 0.0
        %815 = vmatpush1.msra.mxu0 0.0
        %816 = vmatprep.subr.mxu0 0.0
        %817 = vmatpush1.msra.mxu0 0.0
        %818 = vmatprep.subr.mxu0 0.0
        %819 = vmatpush1.msra.mxu0 0.0
        %820 = vmatprep.subr.mxu0 0.0
        %821 = vmatpush1.msra.mxu0 0.0
        %822 = vmatprep.subr.mxu0 0.0
        %823 = vmatpush1.msra.mxu0 0.0
        %824 = vmatprep.subr.mxu0 0.0
        %825 = vmatpush1.msra.mxu0 0.0
        %826 = vmatprep.subr.mxu0 0.0
        %827 = vmatpush1.msra.mxu0 0.0
        %828 = vmatprep.subr.mxu0 0.0
        %829 = vmatpush1.msra.mxu0 0.0
        %830 = vmatprep.subr.mxu0 0.0
        %831 = vmatpush1.msra.mxu0 0.0
        %832 = vmatprep.subr.mxu0 0.0
        %833 = vmatpush1.msra.mxu0 0.0
        %834 = vmatprep.mubr.f32.mxu0 0.0
        %835 = vmatmul.mubr.f32.gmra.mrb[0].mxu0 %v768
        %v836 = vpop.f32.mrb[0].mxu0
        %v837 = vadd.f32 %v764, %v836
        %v838 = vpop.f32.mrb[0].mxu0
        %839 = vdwg.mxu0
        %v840 = vadd.f32 %v758, %v837
        %vm841 = vcmp.ge.f32.partialorder %v840, 0.0
        %v842 = vmul.f32 %v840, 0.01
        %v843 = vsel %vm841, %v840, %v842
        %844 = vst [vmem:[%s323] sm:$0xff] %v843
        %s845 = sand.u32 %s225, 1
        %s846 = scalar_lea.sflag [#allocation3], %s845
        %s847 = sand.u32 %s225, 1
        %s848 = smul.addr %s847, 8
        %s849 = scalar_lea.vmem [#allocation2], %s848
        // Predicated region
        $region57: #{resnet_block_1d.1} parent=55 // pred_check
          %p850 = pneg %p235
        $region58: #{resnet_block_1d.1} parent=55 // pred_check_branch
          %852 = sbr.rel (%p850) target = $region60
        $region59: #{resnet_block_1d.1} parent=55 // pred_region
          %s854 = ssub.s32 128, 128
          %855 = vsyncadd %s846, %s854
          %s856 = smul.addr %s23, 128
          %s857 = scalar_lea.hbm %s9, %s856
          %s859 = sshll.u32 %s849, 4
          %s860 = int_to_ptr.vmem [resolvable:$true] %s859
          %862 = dma.vmem_to_hbm [thread:$0]  %s860, 128, %s857, %s846
        $region60: #{resnet_block_1d.1} parent=55 // pred_fallthru
          _
      $region56: #{resnet_block_1d.1} parent=5 // pred_fallthru
        _
      %p863 = scmp.le.s32.totalorder 2, %s18
      // Predicated region
      $region61: #{resnet_block_1d.1} parent=5 // pred_check
        %p864 = pneg %p863
      $region62: #{resnet_block_1d.1} parent=5 // pred_check_branch
        %866 = sbr.rel (%p864) target = $region64
      $region63: #{resnet_block_1d.1} parent=5 // pred_region
        %s867 = ssub.s32 %s18, 2
        // Predicated region
        $region65: #{resnet_block_1d.1} parent=63 // pred_check
          %p868 = pneg %p241
        $region66: #{resnet_block_1d.1} parent=63 // pred_check_branch
          %870 = sbr.rel (%p868) target = $region68
        $region67: #{resnet_block_1d.1} parent=63 // pred_region
          %s871 = sand.u32 %s226, 1
          %s872 = scalar_lea.sflag [#allocation3], %s871
          %s873 = sand.u32 %s226, 1
          %s874 = smul.addr %s873, 8
          %s875 = scalar_lea.vmem [#allocation2], %s874
          %876 = dma.done %s872, 128
        $region68: #{resnet_block_1d.1} parent=63 // pred_fallthru
          _
      $region64: #{resnet_block_1d.1} parent=5 // pred_fallthru
        _
    $region6: #{resnet_block_1d.1} parent=1 // loop_footer
      %s22 = sadd.s32 1, %s18
    $region7: #{resnet_block_1d.1} parent=1 // loop_footer_branch
      %17 = sbr.rel target = $region3
    $region8: #{resnet_block_1d.1} parent=1 // loop_exit
      _
    %877 = vsyncpa [#allocation3], 1
    %s878 = scalar_lea.sflag [#allocation3], 1
    %879 = vsyncpa %s878, 1

</llo_original>
